<compile_context>
chip_gen: v6e
topology: v6e:2x2x1
jax: 0.10.0
libtpu: 0.0.40
codegen_flags: <defaults>
</compile_context>

<pallas_src>
import jax
import jax.numpy as jnp
from jax.experimental import pallas as pl
from jax.experimental.pallas import tpu as pltpu


def _tap_masks(H, W):
    """(9, H*W) float32 0/1 masks; mask[t, p] = 1 iff tap t reads a valid pixel.

    Tap order t = (dh+1)*3 + (dw+1) matches the weight-slab / weight-stack
    layout built in the wrapper.  Computed once on the host/XLA side so the
    kernel does zero iota/div/mod/compare work (perf-review item).
    """
    HW = H * W
    hh = jax.lax.broadcasted_iota(jnp.int32, (H, W), 0).reshape(HW)
    ww = jax.lax.broadcasted_iota(jnp.int32, (H, W), 1).reshape(HW)
    rows = []
    for dh in (-1, 0, 1):
        for dw in (-1, 0, 1):
            valid = jnp.ones((HW,), jnp.bool_)
            if dh > 0:
                valid = valid & (hh < H - dh)
            elif dh < 0:
                valid = valid & (hh >= -dh)
            if dw > 0:
                valid = valid & (ww < W - dw)
            elif dw < 0:
                valid = valid & (ww >= -dw)
            rows.append(valid)
    return jnp.stack(rows).astype(jnp.float32)  # (9, HW)


def _make_rcu_kernel(H, W, C, BT, use_tap_accum, compute_dtype):
    """relu -> conv3x3 -> relu -> conv3x3 -> +x on a (BT, C, H*W) block."""
    HW = H * W
    TAPS = tuple((dh, dw) for dh in (-1, 0, 1) for dw in (-1, 0, 1))

    def kernel(x_ref, masks_ref, w1_ref, b1_ref, w2_ref, b2_ref, o_ref):
        # x_ref    : (BT, C, HW)  activations, spatial on lanes
        # masks_ref: (9, HW)      f32 0/1 halo masks (row 4 = center, unused)
        # w*_ref   : (C, 9C) bf16 (slab path)  or  (9, C, C) bf16 (tap path)
        # b*_ref   : (C, 1)  f32
        # o_ref    : (BT, C, HW)
        masks = masks_ref[...]  # loaded once; shared by both convs & all batch

        def shifted_taps(a):
            # a: (C, HW) f32 -> yields (tap_index, masked shifted activation).
            for t, (dh, dw) in enumerate(TAPS):
                off = dh * W + dw  # flat shift for this tap
                if off == 0:
                    yield t, a
                else:
                    # shifted[p] = a[p + off] (XLU rotate); the mask zeroes the
                    # wrapped lanes, which is exactly the conv's zero padding.
                    sh = pltpu.roll(a, (-off) % HW, axis=1)
                    yield t, sh * masks[t:t + 1, :]

        if use_tap_accum:
            # 9 small matmuls accumulated in f32: no (9C, HW) patch slab.
            def conv3x3(a, w_ref, b_ref):
                acc = jnp.zeros((C, HW), jnp.float32)
                for t, col in shifted_taps(a):
                    acc = acc + jnp.dot(w_ref[t], col.astype(compute_dtype),
                                        preferred_element_type=jnp.float32)
                return acc + b_ref[...]
        else:
            # Single im2col MXU matmul: (C, 9C) x (9C, HW) -> (C, HW).
            def conv3x3(a, w_ref, b_ref):
                patches = jnp.concatenate(
                    [col for _, col in shifted_taps(a)], axis=0)      # (9C, HW)
                return jnp.dot(w_ref[...], patches.astype(compute_dtype),
                               preferred_element_type=jnp.float32) + b_ref[...]

        # BT is small & static: fusing the batch into one block amortizes the
        # per-grid-step overhead (perf-review item for the small-C regime).
        for b in range(BT):
            a = jnp.maximum(x_ref[b].astype(jnp.float32), 0.0)   # out = relu(x)
            y = conv3x3(a, w1_ref, b1_ref)                       # out = conv1(out)
            y = jnp.maximum(y, 0.0)                              # out = relu(out)
            y = conv3x3(y, w2_ref, b2_ref)                       # out = conv2(out)
            o_ref[b] = (y + x_ref[b].astype(jnp.float32)).astype(o_ref.dtype)

    return kernel


def residual_conv_unit(x_nchw, w1_oihw, b1, w2_oihw, b2,
                       *, compute_dtype=jnp.bfloat16):
    """Pallas implementation of ResidualConvUnit.forward (NCHW in / NCHW out)."""
    B, C, H, W = x_nchw.shape
    HW = H * W

    # Flatten spatial onto the lane axis (free reshape for contiguous NCHW).
    x_flat = x_nchw.reshape(B, C, HW)
    masks = _tap_masks(H, W)

    # Strategy switch (perf review): im2col slab only at small C, tap
    # accumulation at production channel counts.
    use_tap_accum = C >= 64
    if use_tap_accum:
        # OIHW -> (KH, KW, O, I) -> (9, C, C): one (C_out, C_in) slab per tap.
        w1_k = jnp.transpose(w1_oihw, (2, 3, 0, 1)).reshape(9, C, C).astype(compute_dtype)
        w2_k = jnp.transpose(w2_oihw, (2, 3, 0, 1)).reshape(9, C, C).astype(compute_dtype)
        w_block = (9, C, C)
        w_index_map = lambda g: (0, 0, 0)
    else:
        # OIHW -> (O, KH, KW, I) -> (C, 9C): column = tap*C + c_in.
        w1_k = jnp.transpose(w1_oihw, (0, 2, 3, 1)).reshape(C, 9 * C).astype(compute_dtype)
        w2_k = jnp.transpose(w2_oihw, (0, 2, 3, 1)).reshape(C, 9 * C).astype(compute_dtype)
        w_block = (C, 9 * C)
        w_index_map = lambda g: (0, 0)
    b1_col = b1.reshape(C, 1).astype(jnp.float32)
    b2_col = b2.reshape(C, 1).astype(jnp.float32)

    # Batch chunking: fuse the whole batch into one block in the small-C /
    # small-B regime; otherwise one batch element per grid step so the
    # "parallel" axis still gets sharded across v7x's two TensorCores.
    if C < 64 and B * C * HW * x_flat.dtype.itemsize <= (2 << 20):
        bt = B
    else:
        bt = 1
    grid = (B // bt,)

    kernel = _make_rcu_kernel(H, W, C, bt, use_tap_accum, compute_dtype)

    out_flat = pl.pallas_call(
        kernel,
        out_shape=jax.ShapeDtypeStruct((B, C, HW), x_flat.dtype),
        grid_spec=pltpu.PrefetchScalarGridSpec(
            num_scalar_prefetch=0,
            grid=grid,
            in_specs=[
                pl.BlockSpec((bt, C, HW), lambda g: (g, 0, 0)),
                # Constant blocks below: fetched once (constant index_map).
                pl.BlockSpec((9, HW), lambda g: (0, 0)),
                pl.BlockSpec(w_block, w_index_map),
                pl.BlockSpec((C, 1), lambda g: (0, 0)),
                pl.BlockSpec(w_block, w_index_map),
                pl.BlockSpec((C, 1), lambda g: (0, 0)),
            ],
            out_specs=pl.BlockSpec((bt, C, HW), lambda g: (g, 0, 0)),
        ),
        compiler_params=pltpu.CompilerParams(
            dimension_semantics=("parallel",),       # batch chunks independent
            vmem_limit_bytes=32 * 1024 * 1024,       # explicit scoped-VMEM cap
        ),
    )(x_flat, masks, w1_k, b1_col, w2_k, b2_col)

    return out_flat.reshape(B, C, H, W)


def _reference(x, w1, b1, w2, b2):
    """Pure-JAX f32 reference matching the PyTorch module (NCHW / OIHW)."""
    def conv(inp, w, b):
        y = jax.lax.conv_general_dilated(
            inp, w, window_strides=(1, 1), padding=((1, 1), (1, 1)),
            dimension_numbers=("NCHW", "OIHW", "NCHW"))
        return y + b.reshape(1, -1, 1, 1)

    out = jnp.maximum(x, 0.0)
    out = conv(out, w1, b1)
    out = jnp.maximum(out, 0.0)
    out = conv(out, w2, b2)
    return out + x


def _make_params(key, C):
    kw1, kb1, kw2, kb2 = jax.random.split(key, 4)
    scale = (9 * C) ** -0.5
    w1 = jax.random.normal(kw1, (C, C, 3, 3), jnp.float32) * scale
    b1 = jax.random.normal(kb1, (C,), jnp.float32) * 0.1
    w2 = jax.random.normal(kw2, (C, C, 3, 3), jnp.float32) * scale
    b2 = jax.random.normal(kb2, (C,), jnp.float32) * 0.1
    return w1, b1, w2, b2


if __name__ == "__main__":
    key = jax.random.PRNGKey(0)
    kx1, kp1, kx2, kp2 = jax.random.split(key, 4)

    # Config 1: demo size (features=8) -> im2col-slab path, whole batch fused.
    B, C, H, W = 2, 8, 16, 16
    x = jax.random.normal(kx1, (B, C, H, W), jnp.float32)
    w1, b1, w2, b2 = _make_params(kp1, C)
    out = jax.block_until_ready(residual_conv_unit(x, w1, b1, w2, b2))
    ref = _reference(x, w1, b1, w2, b2)
    assert out.shape == (B, C, H, W)
    # bf16 MXU operands -> tolerance loosened vs the old pure-f32 kernel.
    assert jnp.allclose(out, ref, atol=5e-2, rtol=5e-2), (
        f"slab path mismatch, max abs err = {jnp.max(jnp.abs(out - ref))}")

    # Config 2: features=64 -> exercises the 9-tap-accumulation path
    # (the production-channel-count strategy), still spatially tiny.
    B2, C2 = 1, 64
    x2 = jax.random.normal(kx2, (B2, C2, H, W), jnp.float32)
    w1b, b1b, w2b, b2b = _make_params(kp2, C2)
    out2 = jax.block_until_ready(residual_conv_unit(x2, w1b, b1b, w2b, b2b))
    ref2 = _reference(x2, w1b, b1b, w2b, b2b)
    assert out2.shape == (B2, C2, H, W)
    assert jnp.allclose(out2, ref2, atol=5e-2, rtol=5e-2), (
        f"tap path mismatch, max abs err = {jnp.max(jnp.abs(out2 - ref2))}")

    print("KERNEL_OK")
</pallas_src>

<mosaic_0001>
module attributes {stable_mosaic.version = 11 : i64} {
  func.func @kernel(%arg0: i32, %arg1: memref<2x8x256xf32, #tpu.memory_space<vmem>>, %arg2: memref<9x256xf32, #tpu.memory_space<vmem>>, %arg3: memref<8x72xbf16, #tpu.memory_space<vmem>>, %arg4: memref<8x1xf32, #tpu.memory_space<vmem>>, %arg5: memref<8x72xbf16, #tpu.memory_space<vmem>>, %arg6: memref<8x1xf32, #tpu.memory_space<vmem>>, %arg7: memref<2x8x256xf32, #tpu.memory_space<vmem>>) attributes {dimension_semantics = [#tpu.dimension_semantics<parallel>], iteration_bounds = array<i64: 1>, scalar_prefetch = 0 : i64, scratch_operands = 0 : i64, tpu.core_type = #tpu.core_type<tc>, window_params = [{transform_indices = @transform_0, window_bounds = array<i64: 2, 8, 256>}, {pipeline_mode = #tpu.pipeline_mode<synchronous>, transform_indices = @transform_1, window_bounds = array<i64: 9, 256>}, {pipeline_mode = #tpu.pipeline_mode<synchronous>, transform_indices = @transform_2, window_bounds = array<i64: 8, 72>}, {pipeline_mode = #tpu.pipeline_mode<synchronous>, transform_indices = @transform_3, window_bounds = array<i64: 8, 1>}, {pipeline_mode = #tpu.pipeline_mode<synchronous>, transform_indices = @transform_4, window_bounds = array<i64: 8, 72>}, {pipeline_mode = #tpu.pipeline_mode<synchronous>, transform_indices = @transform_5, window_bounds = array<i64: 8, 1>}, {transform_indices = @transform_6, window_bounds = array<i64: 2, 8, 256>}]} {
    %c0 = arith.constant 0 : index
    %c0_0 = arith.constant 0 : index
    %0 = vector.load %arg2[%c0, %c0_0] : memref<9x256xf32, #tpu.memory_space<vmem>>, vector<9x256xf32>
    %c0_1 = arith.constant 0 : index
    %c0_2 = arith.constant 0 : index
    %c0_3 = arith.constant 0 : index
    %1 = vector.load %arg1[%c0_1, %c0_2, %c0_3] : memref<2x8x256xf32, #tpu.memory_space<vmem>>, vector<1x8x256xf32>
    %2 = vector.shape_cast %1 : vector<1x8x256xf32> to vector<8x256xf32>
    %cst = arith.constant 0.000000e+00 : f32
    %3 = vector.broadcast %cst : f32 to vector<8x256xf32>
    %4 = arith.maximumf %2, %3 : vector<8x256xf32>
    %c17_i32 = arith.constant 17 : i32
    %5 = tpu.dynamic_rotate %4 by %c17_i32 dim 1 : vector<8x256xf32>, i32 -> vector<8x256xf32>
    %6 = vector.extract_strided_slice %0 {offsets = [0, 0], sizes = [1, 256], strides = [1, 1]} : vector<9x256xf32> to vector<1x256xf32>
    %7 = vector.broadcast %6 : vector<1x256xf32> to vector<8x256xf32>
    %8 = arith.mulf %5, %7 : vector<8x256xf32>
    %c16_i32 = arith.constant 16 : i32
    %9 = tpu.dynamic_rotate %4 by %c16_i32 dim 1 : vector<8x256xf32>, i32 -> vector<8x256xf32>
    %10 = vector.extract_strided_slice %0 {offsets = [1, 0], sizes = [1, 256], strides = [1, 1]} : vector<9x256xf32> to vector<1x256xf32>
    %11 = vector.broadcast %10 : vector<1x256xf32> to vector<8x256xf32>
    %12 = arith.mulf %9, %11 : vector<8x256xf32>
    %c15_i32 = arith.constant 15 : i32
    %13 = tpu.dynamic_rotate %4 by %c15_i32 dim 1 : vector<8x256xf32>, i32 -> vector<8x256xf32>
    %14 = vector.extract_strided_slice %0 {offsets = [2, 0], sizes = [1, 256], strides = [1, 1]} : vector<9x256xf32> to vector<1x256xf32>
    %15 = vector.broadcast %14 : vector<1x256xf32> to vector<8x256xf32>
    %16 = arith.mulf %13, %15 : vector<8x256xf32>
    %c1_i32 = arith.constant 1 : i32
    %17 = tpu.dynamic_rotate %4 by %c1_i32 dim 1 : vector<8x256xf32>, i32 -> vector<8x256xf32>
    %18 = vector.extract_strided_slice %0 {offsets = [3, 0], sizes = [1, 256], strides = [1, 1]} : vector<9x256xf32> to vector<1x256xf32>
    %19 = vector.broadcast %18 : vector<1x256xf32> to vector<8x256xf32>
    %20 = arith.mulf %17, %19 : vector<8x256xf32>
    %c255_i32 = arith.constant 255 : i32
    %21 = tpu.dynamic_rotate %4 by %c255_i32 dim 1 : vector<8x256xf32>, i32 -> vector<8x256xf32>
    %22 = vector.extract_strided_slice %0 {offsets = [5, 0], sizes = [1, 256], strides = [1, 1]} : vector<9x256xf32> to vector<1x256xf32>
    %23 = vector.broadcast %22 : vector<1x256xf32> to vector<8x256xf32>
    %24 = arith.mulf %21, %23 : vector<8x256xf32>
    %c241_i32 = arith.constant 241 : i32
    %25 = tpu.dynamic_rotate %4 by %c241_i32 dim 1 : vector<8x256xf32>, i32 -> vector<8x256xf32>
    %26 = vector.extract_strided_slice %0 {offsets = [6, 0], sizes = [1, 256], strides = [1, 1]} : vector<9x256xf32> to vector<1x256xf32>
    %27 = vector.broadcast %26 : vector<1x256xf32> to vector<8x256xf32>
    %28 = arith.mulf %25, %27 : vector<8x256xf32>
    %c240_i32 = arith.constant 240 : i32
    %29 = tpu.dynamic_rotate %4 by %c240_i32 dim 1 : vector<8x256xf32>, i32 -> vector<8x256xf32>
    %30 = vector.extract_strided_slice %0 {offsets = [7, 0], sizes = [1, 256], strides = [1, 1]} : vector<9x256xf32> to vector<1x256xf32>
    %31 = vector.broadcast %30 : vector<1x256xf32> to vector<8x256xf32>
    %32 = arith.mulf %29, %31 : vector<8x256xf32>
    %c239_i32 = arith.constant 239 : i32
    %33 = tpu.dynamic_rotate %4 by %c239_i32 dim 1 : vector<8x256xf32>, i32 -> vector<8x256xf32>
    %34 = vector.extract_strided_slice %0 {offsets = [8, 0], sizes = [1, 256], strides = [1, 1]} : vector<9x256xf32> to vector<1x256xf32>
    %35 = vector.broadcast %34 : vector<1x256xf32> to vector<8x256xf32>
    %36 = arith.mulf %33, %35 : vector<8x256xf32>
    %37 = tpu.concatenate %8, %12, %16, %20, %4, %24, %28, %32, %36 in 0 : vector<8x256xf32>, vector<8x256xf32>, vector<8x256xf32>, vector<8x256xf32>, vector<8x256xf32>, vector<8x256xf32>, vector<8x256xf32>, vector<8x256xf32>, vector<8x256xf32> -> vector<72x256xf32>
    %c0_4 = arith.constant 0 : index
    %c0_5 = arith.constant 0 : index
    %38 = vector.load %arg3[%c0_4, %c0_5] : memref<8x72xbf16, #tpu.memory_space<vmem>>, vector<8x72xbf16>
    %39 = arith.truncf %37 : vector<72x256xf32> to vector<72x256xbf16>
    %cst_6 = arith.constant dense<0.000000e+00> : vector<8x256xf32>
    %40 = tpu.matmul %38, %39, %cst_6 {dimension_numbers = #tpu.dot_dimension_numbers<[1], [0], [0], [1], [0, 0, 1, 1], [], []>} : vector<8x72xbf16>, vector<72x256xbf16>, vector<8x256xf32> -> vector<8x256xf32>
    %c0_7 = arith.constant 0 : index
    %c0_8 = arith.constant 0 : index
    %41 = vector.load %arg4[%c0_7, %c0_8] : memref<8x1xf32, #tpu.memory_space<vmem>>, vector<8x1xf32>
    %42 = vector.broadcast %41 : vector<8x1xf32> to vector<8x256xf32>
    %43 = arith.addf %40, %42 : vector<8x256xf32>
    %cst_9 = arith.constant 0.000000e+00 : f32
    %44 = vector.broadcast %cst_9 : f32 to vector<8x256xf32>
    %45 = arith.maximumf %43, %44 : vector<8x256xf32>
    %c17_i32_10 = arith.constant 17 : i32
    %46 = tpu.dynamic_rotate %45 by %c17_i32_10 dim 1 : vector<8x256xf32>, i32 -> vector<8x256xf32>
    %47 = vector.extract_strided_slice %0 {offsets = [0, 0], sizes = [1, 256], strides = [1, 1]} : vector<9x256xf32> to vector<1x256xf32>
    %48 = vector.broadcast %47 : vector<1x256xf32> to vector<8x256xf32>
    %49 = arith.mulf %46, %48 : vector<8x256xf32>
    %c16_i32_11 = arith.constant 16 : i32
    %50 = tpu.dynamic_rotate %45 by %c16_i32_11 dim 1 : vector<8x256xf32>, i32 -> vector<8x256xf32>
    %51 = vector.extract_strided_slice %0 {offsets = [1, 0], sizes = [1, 256], strides = [1, 1]} : vector<9x256xf32> to vector<1x256xf32>
    %52 = vector.broadcast %51 : vector<1x256xf32> to vector<8x256xf32>
    %53 = arith.mulf %50, %52 : vector<8x256xf32>
    %c15_i32_12 = arith.constant 15 : i32
    %54 = tpu.dynamic_rotate %45 by %c15_i32_12 dim 1 : vector<8x256xf32>, i32 -> vector<8x256xf32>
    %55 = vector.extract_strided_slice %0 {offsets = [2, 0], sizes = [1, 256], strides = [1, 1]} : vector<9x256xf32> to vector<1x256xf32>
    %56 = vector.broadcast %55 : vector<1x256xf32> to vector<8x256xf32>
    %57 = arith.mulf %54, %56 : vector<8x256xf32>
    %c1_i32_13 = arith.constant 1 : i32
    %58 = tpu.dynamic_rotate %45 by %c1_i32_13 dim 1 : vector<8x256xf32>, i32 -> vector<8x256xf32>
    %59 = vector.extract_strided_slice %0 {offsets = [3, 0], sizes = [1, 256], strides = [1, 1]} : vector<9x256xf32> to vector<1x256xf32>
    %60 = vector.broadcast %59 : vector<1x256xf32> to vector<8x256xf32>
    %61 = arith.mulf %58, %60 : vector<8x256xf32>
    %c255_i32_14 = arith.constant 255 : i32
    %62 = tpu.dynamic_rotate %45 by %c255_i32_14 dim 1 : vector<8x256xf32>, i32 -> vector<8x256xf32>
    %63 = vector.extract_strided_slice %0 {offsets = [5, 0], sizes = [1, 256], strides = [1, 1]} : vector<9x256xf32> to vector<1x256xf32>
    %64 = vector.broadcast %63 : vector<1x256xf32> to vector<8x256xf32>
    %65 = arith.mulf %62, %64 : vector<8x256xf32>
    %c241_i32_15 = arith.constant 241 : i32
    %66 = tpu.dynamic_rotate %45 by %c241_i32_15 dim 1 : vector<8x256xf32>, i32 -> vector<8x256xf32>
    %67 = vector.extract_strided_slice %0 {offsets = [6, 0], sizes = [1, 256], strides = [1, 1]} : vector<9x256xf32> to vector<1x256xf32>
    %68 = vector.broadcast %67 : vector<1x256xf32> to vector<8x256xf32>
    %69 = arith.mulf %66, %68 : vector<8x256xf32>
    %c240_i32_16 = arith.constant 240 : i32
    %70 = tpu.dynamic_rotate %45 by %c240_i32_16 dim 1 : vector<8x256xf32>, i32 -> vector<8x256xf32>
    %71 = vector.extract_strided_slice %0 {offsets = [7, 0], sizes = [1, 256], strides = [1, 1]} : vector<9x256xf32> to vector<1x256xf32>
    %72 = vector.broadcast %71 : vector<1x256xf32> to vector<8x256xf32>
    %73 = arith.mulf %70, %72 : vector<8x256xf32>
    %c239_i32_17 = arith.constant 239 : i32
    %74 = tpu.dynamic_rotate %45 by %c239_i32_17 dim 1 : vector<8x256xf32>, i32 -> vector<8x256xf32>
    %75 = vector.extract_strided_slice %0 {offsets = [8, 0], sizes = [1, 256], strides = [1, 1]} : vector<9x256xf32> to vector<1x256xf32>
    %76 = vector.broadcast %75 : vector<1x256xf32> to vector<8x256xf32>
    %77 = arith.mulf %74, %76 : vector<8x256xf32>
    %78 = tpu.concatenate %49, %53, %57, %61, %45, %65, %69, %73, %77 in 0 : vector<8x256xf32>, vector<8x256xf32>, vector<8x256xf32>, vector<8x256xf32>, vector<8x256xf32>, vector<8x256xf32>, vector<8x256xf32>, vector<8x256xf32>, vector<8x256xf32> -> vector<72x256xf32>
    %c0_18 = arith.constant 0 : index
    %c0_19 = arith.constant 0 : index
    %79 = vector.load %arg5[%c0_18, %c0_19] : memref<8x72xbf16, #tpu.memory_space<vmem>>, vector<8x72xbf16>
    %80 = arith.truncf %78 : vector<72x256xf32> to vector<72x256xbf16>
    %cst_20 = arith.constant dense<0.000000e+00> : vector<8x256xf32>
    %81 = tpu.matmul %79, %80, %cst_20 {dimension_numbers = #tpu.dot_dimension_numbers<[1], [0], [0], [1], [0, 0, 1, 1], [], []>} : vector<8x72xbf16>, vector<72x256xbf16>, vector<8x256xf32> -> vector<8x256xf32>
    %c0_21 = arith.constant 0 : index
    %c0_22 = arith.constant 0 : index
    %82 = vector.load %arg6[%c0_21, %c0_22] : memref<8x1xf32, #tpu.memory_space<vmem>>, vector<8x1xf32>
    %83 = vector.broadcast %82 : vector<8x1xf32> to vector<8x256xf32>
    %84 = arith.addf %81, %83 : vector<8x256xf32>
    %c0_23 = arith.constant 0 : index
    %c0_24 = arith.constant 0 : index
    %c0_25 = arith.constant 0 : index
    %85 = vector.load %arg1[%c0_23, %c0_24, %c0_25] : memref<2x8x256xf32, #tpu.memory_space<vmem>>, vector<1x8x256xf32>
    %86 = vector.shape_cast %85 : vector<1x8x256xf32> to vector<8x256xf32>
    %87 = arith.addf %84, %86 : vector<8x256xf32>
    %c0_26 = arith.constant 0 : index
    %c0_27 = arith.constant 0 : index
    %c0_28 = arith.constant 0 : index
    %88 = vector.load %arg7[%c0_26, %c0_27, %c0_28] : memref<2x8x256xf32, #tpu.memory_space<vmem>>, vector<1x8x256xf32>
    %89 = vector.shape_cast %88 : vector<1x8x256xf32> to vector<8x256xf32>
    %90 = vector.shape_cast %87 : vector<8x256xf32> to vector<1x8x256xf32>
    tpu.vector_store %arg7[%c0_26, %c0_27, %c0_28], %90 {strides = array<i32>} : memref<2x8x256xf32, #tpu.memory_space<vmem>>, vector<1x8x256xf32>,
    %c1 = arith.constant 1 : index
    %c0_29 = arith.constant 0 : index
    %c0_30 = arith.constant 0 : index
    %91 = vector.load %arg1[%c1, %c0_29, %c0_30] : memref<2x8x256xf32, #tpu.memory_space<vmem>>, vector<1x8x256xf32>
    %92 = vector.shape_cast %91 : vector<1x8x256xf32> to vector<8x256xf32>
    %cst_31 = arith.constant 0.000000e+00 : f32
    %93 = vector.broadcast %cst_31 : f32 to vector<8x256xf32>
    %94 = arith.maximumf %92, %93 : vector<8x256xf32>
    %c17_i32_32 = arith.constant 17 : i32
    %95 = tpu.dynamic_rotate %94 by %c17_i32_32 dim 1 : vector<8x256xf32>, i32 -> vector<8x256xf32>
    %96 = vector.extract_strided_slice %0 {offsets = [0, 0], sizes = [1, 256], strides = [1, 1]} : vector<9x256xf32> to vector<1x256xf32>
    %97 = vector.broadcast %96 : vector<1x256xf32> to vector<8x256xf32>
    %98 = arith.mulf %95, %97 : vector<8x256xf32>
    %c16_i32_33 = arith.constant 16 : i32
    %99 = tpu.dynamic_rotate %94 by %c16_i32_33 dim 1 : vector<8x256xf32>, i32 -> vector<8x256xf32>
    %100 = vector.extract_strided_slice %0 {offsets = [1, 0], sizes = [1, 256], strides = [1, 1]} : vector<9x256xf32> to vector<1x256xf32>
    %101 = vector.broadcast %100 : vector<1x256xf32> to vector<8x256xf32>
    %102 = arith.mulf %99, %101 : vector<8x256xf32>
    %c15_i32_34 = arith.constant 15 : i32
    %103 = tpu.dynamic_rotate %94 by %c15_i32_34 dim 1 : vector<8x256xf32>, i32 -> vector<8x256xf32>
    %104 = vector.extract_strided_slice %0 {offsets = [2, 0], sizes = [1, 256], strides = [1, 1]} : vector<9x256xf32> to vector<1x256xf32>
    %105 = vector.broadcast %104 : vector<1x256xf32> to vector<8x256xf32>
    %106 = arith.mulf %103, %105 : vector<8x256xf32>
    %c1_i32_35 = arith.constant 1 : i32
    %107 = tpu.dynamic_rotate %94 by %c1_i32_35 dim 1 : vector<8x256xf32>, i32 -> vector<8x256xf32>
    %108 = vector.extract_strided_slice %0 {offsets = [3, 0], sizes = [1, 256], strides = [1, 1]} : vector<9x256xf32> to vector<1x256xf32>
    %109 = vector.broadcast %108 : vector<1x256xf32> to vector<8x256xf32>
    %110 = arith.mulf %107, %109 : vector<8x256xf32>
    %c255_i32_36 = arith.constant 255 : i32
    %111 = tpu.dynamic_rotate %94 by %c255_i32_36 dim 1 : vector<8x256xf32>, i32 -> vector<8x256xf32>
    %112 = vector.extract_strided_slice %0 {offsets = [5, 0], sizes = [1, 256], strides = [1, 1]} : vector<9x256xf32> to vector<1x256xf32>
    %113 = vector.broadcast %112 : vector<1x256xf32> to vector<8x256xf32>
    %114 = arith.mulf %111, %113 : vector<8x256xf32>
    %c241_i32_37 = arith.constant 241 : i32
    %115 = tpu.dynamic_rotate %94 by %c241_i32_37 dim 1 : vector<8x256xf32>, i32 -> vector<8x256xf32>
    %116 = vector.extract_strided_slice %0 {offsets = [6, 0], sizes = [1, 256], strides = [1, 1]} : vector<9x256xf32> to vector<1x256xf32>
    %117 = vector.broadcast %116 : vector<1x256xf32> to vector<8x256xf32>
    %118 = arith.mulf %115, %117 : vector<8x256xf32>
    %c240_i32_38 = arith.constant 240 : i32
    %119 = tpu.dynamic_rotate %94 by %c240_i32_38 dim 1 : vector<8x256xf32>, i32 -> vector<8x256xf32>
    %120 = vector.extract_strided_slice %0 {offsets = [7, 0], sizes = [1, 256], strides = [1, 1]} : vector<9x256xf32> to vector<1x256xf32>
    %121 = vector.broadcast %120 : vector<1x256xf32> to vector<8x256xf32>
    %122 = arith.mulf %119, %121 : vector<8x256xf32>
    %c239_i32_39 = arith.constant 239 : i32
    %123 = tpu.dynamic_rotate %94 by %c239_i32_39 dim 1 : vector<8x256xf32>, i32 -> vector<8x256xf32>
    %124 = vector.extract_strided_slice %0 {offsets = [8, 0], sizes = [1, 256], strides = [1, 1]} : vector<9x256xf32> to vector<1x256xf32>
    %125 = vector.broadcast %124 : vector<1x256xf32> to vector<8x256xf32>
    %126 = arith.mulf %123, %125 : vector<8x256xf32>
    %127 = tpu.concatenate %98, %102, %106, %110, %94, %114, %118, %122, %126 in 0 : vector<8x256xf32>, vector<8x256xf32>, vector<8x256xf32>, vector<8x256xf32>, vector<8x256xf32>, vector<8x256xf32>, vector<8x256xf32>, vector<8x256xf32>, vector<8x256xf32> -> vector<72x256xf32>
    %c0_40 = arith.constant 0 : index
    %c0_41 = arith.constant 0 : index
    %128 = vector.load %arg3[%c0_40, %c0_41] : memref<8x72xbf16, #tpu.memory_space<vmem>>, vector<8x72xbf16>
    %129 = arith.truncf %127 : vector<72x256xf32> to vector<72x256xbf16>
    %cst_42 = arith.constant dense<0.000000e+00> : vector<8x256xf32>
    %130 = tpu.matmul %128, %129, %cst_42 {dimension_numbers = #tpu.dot_dimension_numbers<[1], [0], [0], [1], [0, 0, 1, 1], [], []>} : vector<8x72xbf16>, vector<72x256xbf16>, vector<8x256xf32> -> vector<8x256xf32>
    %c0_43 = arith.constant 0 : index
    %c0_44 = arith.constant 0 : index
    %131 = vector.load %arg4[%c0_43, %c0_44] : memref<8x1xf32, #tpu.memory_space<vmem>>, vector<8x1xf32>
    %132 = vector.broadcast %131 : vector<8x1xf32> to vector<8x256xf32>
    %133 = arith.addf %130, %132 : vector<8x256xf32>
    %cst_45 = arith.constant 0.000000e+00 : f32
    %134 = vector.broadcast %cst_45 : f32 to vector<8x256xf32>
    %135 = arith.maximumf %133, %134 : vector<8x256xf32>
    %c17_i32_46 = arith.constant 17 : i32
    %136 = tpu.dynamic_rotate %135 by %c17_i32_46 dim 1 : vector<8x256xf32>, i32 -> vector<8x256xf32>
    %137 = vector.extract_strided_slice %0 {offsets = [0, 0], sizes = [1, 256], strides = [1, 1]} : vector<9x256xf32> to vector<1x256xf32>
    %138 = vector.broadcast %137 : vector<1x256xf32> to vector<8x256xf32>
    %139 = arith.mulf %136, %138 : vector<8x256xf32>
    %c16_i32_47 = arith.constant 16 : i32
    %140 = tpu.dynamic_rotate %135 by %c16_i32_47 dim 1 : vector<8x256xf32>, i32 -> vector<8x256xf32>
    %141 = vector.extract_strided_slice %0 {offsets = [1, 0], sizes = [1, 256], strides = [1, 1]} : vector<9x256xf32> to vector<1x256xf32>
    %142 = vector.broadcast %141 : vector<1x256xf32> to vector<8x256xf32>
    %143 = arith.mulf %140, %142 : vector<8x256xf32>
    %c15_i32_48 = arith.constant 15 : i32
    %144 = tpu.dynamic_rotate %135 by %c15_i32_48 dim 1 : vector<8x256xf32>, i32 -> vector<8x256xf32>
    %145 = vector.extract_strided_slice %0 {offsets = [2, 0], sizes = [1, 256], strides = [1, 1]} : vector<9x256xf32> to vector<1x256xf32>
    %146 = vector.broadcast %145 : vector<1x256xf32> to vector<8x256xf32>
    %147 = arith.mulf %144, %146 : vector<8x256xf32>
    %c1_i32_49 = arith.constant 1 : i32
    %148 = tpu.dynamic_rotate %135 by %c1_i32_49 dim 1 : vector<8x256xf32>, i32 -> vector<8x256xf32>
    %149 = vector.extract_strided_slice %0 {offsets = [3, 0], sizes = [1, 256], strides = [1, 1]} : vector<9x256xf32> to vector<1x256xf32>
    %150 = vector.broadcast %149 : vector<1x256xf32> to vector<8x256xf32>
    %151 = arith.mulf %148, %150 : vector<8x256xf32>
    %c255_i32_50 = arith.constant 255 : i32
    %152 = tpu.dynamic_rotate %135 by %c255_i32_50 dim 1 : vector<8x256xf32>, i32 -> vector<8x256xf32>
    %153 = vector.extract_strided_slice %0 {offsets = [5, 0], sizes = [1, 256], strides = [1, 1]} : vector<9x256xf32> to vector<1x256xf32>
    %154 = vector.broadcast %153 : vector<1x256xf32> to vector<8x256xf32>
    %155 = arith.mulf %152, %154 : vector<8x256xf32>
    %c241_i32_51 = arith.constant 241 : i32
    %156 = tpu.dynamic_rotate %135 by %c241_i32_51 dim 1 : vector<8x256xf32>, i32 -> vector<8x256xf32>
    %157 = vector.extract_strided_slice %0 {offsets = [6, 0], sizes = [1, 256], strides = [1, 1]} : vector<9x256xf32> to vector<1x256xf32>
    %158 = vector.broadcast %157 : vector<1x256xf32> to vector<8x256xf32>
    %159 = arith.mulf %156, %158 : vector<8x256xf32>
    %c240_i32_52 = arith.constant 240 : i32
    %160 = tpu.dynamic_rotate %135 by %c240_i32_52 dim 1 : vector<8x256xf32>, i32 -> vector<8x256xf32>
    %161 = vector.extract_strided_slice %0 {offsets = [7, 0], sizes = [1, 256], strides = [1, 1]} : vector<9x256xf32> to vector<1x256xf32>
    %162 = vector.broadcast %161 : vector<1x256xf32> to vector<8x256xf32>
    %163 = arith.mulf %160, %162 : vector<8x256xf32>
    %c239_i32_53 = arith.constant 239 : i32
    %164 = tpu.dynamic_rotate %135 by %c239_i32_53 dim 1 : vector<8x256xf32>, i32 -> vector<8x256xf32>
    %165 = vector.extract_strided_slice %0 {offsets = [8, 0], sizes = [1, 256], strides = [1, 1]} : vector<9x256xf32> to vector<1x256xf32>
    %166 = vector.broadcast %165 : vector<1x256xf32> to vector<8x256xf32>
    %167 = arith.mulf %164, %166 : vector<8x256xf32>
    %168 = tpu.concatenate %139, %143, %147, %151, %135, %155, %159, %163, %167 in 0 : vector<8x256xf32>, vector<8x256xf32>, vector<8x256xf32>, vector<8x256xf32>, vector<8x256xf32>, vector<8x256xf32>, vector<8x256xf32>, vector<8x256xf32>, vector<8x256xf32> -> vector<72x256xf32>
    %c0_54 = arith.constant 0 : index
    %c0_55 = arith.constant 0 : index
    %169 = vector.load %arg5[%c0_54, %c0_55] : memref<8x72xbf16, #tpu.memory_space<vmem>>, vector<8x72xbf16>
    %170 = arith.truncf %168 : vector<72x256xf32> to vector<72x256xbf16>
    %cst_56 = arith.constant dense<0.000000e+00> : vector<8x256xf32>
    %171 = tpu.matmul %169, %170, %cst_56 {dimension_numbers = #tpu.dot_dimension_numbers<[1], [0], [0], [1], [0, 0, 1, 1], [], []>} : vector<8x72xbf16>, vector<72x256xbf16>, vector<8x256xf32> -> vector<8x256xf32>
    %c0_57 = arith.constant 0 : index
    %c0_58 = arith.constant 0 : index
    %172 = vector.load %arg6[%c0_57, %c0_58] : memref<8x1xf32, #tpu.memory_space<vmem>>, vector<8x1xf32>
    %173 = vector.broadcast %172 : vector<8x1xf32> to vector<8x256xf32>
    %174 = arith.addf %171, %173 : vector<8x256xf32>
    %c1_59 = arith.constant 1 : index
    %c0_60 = arith.constant 0 : index
    %c0_61 = arith.constant 0 : index
    %175 = vector.load %arg1[%c1_59, %c0_60, %c0_61] : memref<2x8x256xf32, #tpu.memory_space<vmem>>, vector<1x8x256xf32>
    %176 = vector.shape_cast %175 : vector<1x8x256xf32> to vector<8x256xf32>
    %177 = arith.addf %174, %176 : vector<8x256xf32>
    %c1_62 = arith.constant 1 : index
    %c0_63 = arith.constant 0 : index
    %c0_64 = arith.constant 0 : index
    %178 = vector.load %arg7[%c1_62, %c0_63, %c0_64] : memref<2x8x256xf32, #tpu.memory_space<vmem>>, vector<1x8x256xf32>
    %179 = vector.shape_cast %178 : vector<1x8x256xf32> to vector<8x256xf32>
    %180 = vector.shape_cast %177 : vector<8x256xf32> to vector<1x8x256xf32>
    tpu.vector_store %arg7[%c1_62, %c0_63, %c0_64], %180 {strides = array<i32>} : memref<2x8x256xf32, #tpu.memory_space<vmem>>, vector<1x8x256xf32>,
    return
  }
  func.func @transform_0(%arg0: i32) -> (i32, i32, i32) {
    %c0_i32 = arith.constant 0 : i32
    %c0_i32_0 = arith.constant 0 : i32
    %c0_i32_1 = arith.constant 0 : i32
    return %arg0, %c0_i32, %c0_i32_0 : i32, i32, i32
  }
  func.func @transform_1(%arg0: i32) -> (i32, i32) {
    %c0_i32 = arith.constant 0 : i32
    %c0_i32_0 = arith.constant 0 : i32
    %c0_i32_1 = arith.constant 0 : i32
    return %c0_i32, %c0_i32_0 : i32, i32
  }
  func.func @transform_2(%arg0: i32) -> (i32, i32) {
    %c0_i32 = arith.constant 0 : i32
    %c0_i32_0 = arith.constant 0 : i32
    %c0_i32_1 = arith.constant 0 : i32
    return %c0_i32, %c0_i32_0 : i32, i32
  }
  func.func @transform_3(%arg0: i32) -> (i32, i32) {
    %c0_i32 = arith.constant 0 : i32
    %c0_i32_0 = arith.constant 0 : i32
    %c0_i32_1 = arith.constant 0 : i32
    return %c0_i32, %c0_i32_0 : i32, i32
  }
  func.func @transform_4(%arg0: i32) -> (i32, i32) {
    %c0_i32 = arith.constant 0 : i32
    %c0_i32_0 = arith.constant 0 : i32
    %c0_i32_1 = arith.constant 0 : i32
    return %c0_i32, %c0_i32_0 : i32, i32
  }
  func.func @transform_5(%arg0: i32) -> (i32, i32) {
    %c0_i32 = arith.constant 0 : i32
    %c0_i32_0 = arith.constant 0 : i32
    %c0_i32_1 = arith.constant 0 : i32
    return %c0_i32, %c0_i32_0 : i32, i32
  }
  func.func @transform_6(%arg0: i32) -> (i32, i32, i32) {
    %c0_i32 = arith.constant 0 : i32
    %c0_i32_0 = arith.constant 0 : i32
    %c0_i32_1 = arith.constant 0 : i32
    return %arg0, %c0_i32, %c0_i32_0 : i32, i32, i32
  }
}

</mosaic_0001>

<llo_original>
// kernel: tpu_custom_call.1
$region0: #{tpu_custom_call.1}
  #allocation0 [shape = 'u32[]', space=smem, size = 0x4, offset = 0x4, fixed_abs, tag = 'smem constant byte address 0x4 - core index']
  #allocation1 [shape = 'u32[144,128]{1,0:T(1,128)}', space=vmem, size = 0x12000, scoped, tag = 'internal scratch']
  %s0 = inlined_call_operand.hbm [shape: f32[2,8,256], index: 0, kind: input, shape index: {}]
  %s1 = inlined_call_operand.hbm [shape: f32[9,256], index: 1, kind: input, shape index: {}]
  %s2 = inlined_call_operand.vmem [shape: bf16[8,72], index: 2, kind: input, shape index: {}]
  %s3 = inlined_call_operand.vmem [shape: f32[8,1], index: 3, kind: input, shape index: {}]
  %s4 = inlined_call_operand.vmem [shape: bf16[8,72], index: 4, kind: input, shape index: {}]
  %s5 = inlined_call_operand.vmem [shape: f32[8,1], index: 5, kind: input, shape index: {}]
  %s6 = inlined_call_operand.hbm [shape: f32[2,8,256], index: 6, kind: output, shape index: {}]
  %s7 = sld [smem:[#allocation0]]
  $region42: #{tpu_custom_call.1} parent=0
    _
  %s9 = ssub.s32 1, %s7
  %s10 = scalar_select 0, %s9, %s7
  $region1: #{tpu_custom_call.1} parent=0
    #allocation2 [shape = 'u8[16384]{0}', space=vmem, size = 0x4000, scoped, tag = 'input window, operand 0, single buffered']
    #allocation3 [shape = 's32[1]{0}', space=sflag, size = 0x4, scoped, tag = 'scoped memory for tpu_custom_call.1']
    #allocation4 [shape = 's32[1]{0}', space=sflag, size = 0x4, scoped, tag = 'scoped memory for tpu_custom_call.1']
    #allocation5 [shape = 'u8[16384]{0}', space=vmem, size = 0x4000, scoped, tag = 'input window, operand 1, single buffered']
    #allocation6 [shape = 's32[1]{0}', space=sflag, size = 0x4, scoped, tag = 'scoped memory for tpu_custom_call.1']
    #allocation7 [shape = 'u8[16384]{0}', space=vmem, size = 0x4000, scoped, tag = 'output window, operand 0, single buffered']
    %11 = vsyncpa [#allocation3], 0
    %12 = vsyncpa [#allocation6], 0
    %13 = vsyncpa [#allocation4], 0
    // Predicated region
    $region2: #{tpu_custom_call.1} parent=1 // pred_check
      _
    $region3: #{tpu_custom_call.1} parent=1 // pred_check_branch
      %15 = sbr.rel (0) target = $region5
    $region4: #{tpu_custom_call.1} parent=1 // pred_region
      %s17 = ssub.s32 512, 512
      %18 = vsyncadd [#allocation3], %s17
      %s19 = sshll.u32 [#allocation2], 4
      %s20 = int_to_ptr.vmem [resolvable:$true] %s19
      %25 = dma.hbm_to_vmem [thread:$0]  %s0, 512, %s20, [#allocation3], 256, 256, 16
    $region5: #{tpu_custom_call.1} parent=1 // pred_fallthru
      _
    // Predicated region
    $region6: #{tpu_custom_call.1} parent=1 // pred_check
      _
    $region7: #{tpu_custom_call.1} parent=1 // pred_check_branch
      %27 = sbr.rel (0) target = $region9
    $region8: #{tpu_custom_call.1} parent=1 // pred_region
      %s29 = ssub.s32 512, 512
      %30 = vsyncadd [#allocation6], %s29
      %s31 = sshll.u32 [#allocation5], 4
      %s32 = int_to_ptr.vmem [resolvable:$true] %s31
      %37 = dma.hbm_to_vmem [thread:$0]  %s1, 512, %s32, [#allocation6], 256, 256, 16
    $region9: #{tpu_custom_call.1} parent=1 // pred_fallthru
      _
    // Predicated region
    $region10: #{tpu_custom_call.1} parent=1 // pred_check
      _
    $region11: #{tpu_custom_call.1} parent=1 // pred_check_branch
      %39 = sbr.rel (0) target = $region13
    $region12: #{tpu_custom_call.1} parent=1 // pred_region
      _
    $region13: #{tpu_custom_call.1} parent=1 // pred_fallthru
      _
    // Predicated region
    $region14: #{tpu_custom_call.1} parent=1 // pred_check
      _
    $region15: #{tpu_custom_call.1} parent=1 // pred_check_branch
      %41 = sbr.rel (0) target = $region17
    $region16: #{tpu_custom_call.1} parent=1 // pred_region
      _
    $region17: #{tpu_custom_call.1} parent=1 // pred_fallthru
      _
    // Predicated region
    $region18: #{tpu_custom_call.1} parent=1 // pred_check
      _
    $region19: #{tpu_custom_call.1} parent=1 // pred_check_branch
      %43 = sbr.rel (0) target = $region21
    $region20: #{tpu_custom_call.1} parent=1 // pred_region
      _
    $region21: #{tpu_custom_call.1} parent=1 // pred_fallthru
      _
    // Predicated region
    $region22: #{tpu_custom_call.1} parent=1 // pred_check
      _
    $region23: #{tpu_custom_call.1} parent=1 // pred_check_branch
      %45 = sbr.rel (0) target = $region25
    $region24: #{tpu_custom_call.1} parent=1 // pred_region
      _
    $region25: #{tpu_custom_call.1} parent=1 // pred_fallthru
      _
    // Predicated region
    $region26: #{tpu_custom_call.1} parent=1 // pred_check
      _
    $region27: #{tpu_custom_call.1} parent=1 // pred_check_branch
      %47 = sbr.rel (0) target = $region29
    $region28: #{tpu_custom_call.1} parent=1 // pred_region
      %48 = dma.done [#allocation3], 512
    $region29: #{tpu_custom_call.1} parent=1 // pred_fallthru
      _
    // Predicated region
    $region30: #{tpu_custom_call.1} parent=1 // pred_check
      _
    $region31: #{tpu_custom_call.1} parent=1 // pred_check_branch
      %50 = sbr.rel (0) target = $region33
    $region32: #{tpu_custom_call.1} parent=1 // pred_region
      %51 = dma.done [#allocation6], 512
    $region33: #{tpu_custom_call.1} parent=1 // pred_fallthru
      _
    %v53 = vld [vmem:[#allocation5] sm:$0xff]
    %v54 = vld [vmem:[#allocation5 + $0x8] sm:$0xff]
    %v55 = vld [vmem:[#allocation5 + $0x10] sm:$0x1]
    %v56 = vld [vmem:[#allocation5 + $0x18] sm:$0x1]
    %v57 = vld [vmem:[#allocation2] sm:$0xff]
    %v58 = vld [vmem:[#allocation2 + $0x8] sm:$0xff]
    %v59 = vmax.f32 %v57, 0.0
    %v60 = vmax.f32 %v58, 0.0
    %61 = vrot.lane.b32.xlu0 %v59, 17
    %v62 = vpop.permute.xlu0 %61
    %63 = vrot.lane.b32.xlu0 %v60, 17
    %v64 = vpop.permute.xlu0 %63
    %v65 = vlaneseq
    %v66 = vand.u32 %v65, 127
    %vm67 = vcmp.lt.s32.totalorder %v66, 17
    %v68 = vsel %vm67, %v62, %v64
    %v69 = vsel %vm67, %v64, %v62
    %v70 = vlaneseq
    %v71 = vshrl.u32 %v70, 7
    %v72 = vsub.s32 0, %v71
    %v73 = vrot.slane %v53, %v72
    %v74 = vlaneseq
    %v75 = vshrl.u32 %v74, 7
    %v76 = vsub.s32 0, %v75
    %v77 = vrot.slane %v54, %v76
    %v78 = vmul.f32 %v69, %v73
    %v79 = vmul.f32 %v68, %v77
    %80 = vrot.lane.b32.xlu0 %v59, 16
    %v81 = vpop.permute.xlu0 %80
    %82 = vrot.lane.b32.xlu0 %v60, 16
    %v83 = vpop.permute.xlu0 %82
    %vm84 = vcmp.lt.s32.totalorder %v66, 16
    %v85 = vsel %vm84, %v81, %v83
    %v86 = vsel %vm84, %v83, %v81
    %v87 = vlaneseq
    %v88 = vshrl.u32 %v87, 7
    %v89 = vsub.s32 1, %v88
    %v90 = vrot.slane %v53, %v89
    %v91 = vlaneseq
    %v92 = vshrl.u32 %v91, 7
    %v93 = vsub.s32 1, %v92
    %v94 = vrot.slane %v54, %v93
    %v95 = vmul.f32 %v86, %v90
    %v96 = vmul.f32 %v85, %v94
    %97 = vrot.lane.b32.xlu0 %v59, 15
    %v98 = vpop.permute.xlu0 %97
    %99 = vrot.lane.b32.xlu0 %v60, 15
    %v100 = vpop.permute.xlu0 %99
    %vm101 = vcmp.lt.s32.totalorder %v66, 15
    %v102 = vsel %vm101, %v98, %v100
    %v103 = vsel %vm101, %v100, %v98
    %v104 = vlaneseq
    %v105 = vshrl.u32 %v104, 7
    %v106 = vsub.s32 2, %v105
    %v107 = vrot.slane %v53, %v106
    %v108 = vlaneseq
    %v109 = vshrl.u32 %v108, 7
    %v110 = vsub.s32 2, %v109
    %v111 = vrot.slane %v54, %v110
    %v112 = vmul.f32 %v103, %v107
    %v113 = vmul.f32 %v102, %v111
    %114 = vrot.lane.b32.xlu0 %v59, 1
    %v115 = vpop.permute.xlu0 %114
    %116 = vrot.lane.b32.xlu0 %v60, 1
    %v117 = vpop.permute.xlu0 %116
    %vm118 = vcmp.lt.s32.totalorder %v66, 1
    %v119 = vsel %vm118, %v115, %v117
    %v120 = vsel %vm118, %v117, %v115
    %v121 = vlaneseq
    %v122 = vshrl.u32 %v121, 7
    %v123 = vsub.s32 3, %v122
    %v124 = vrot.slane %v53, %v123
    %v125 = vlaneseq
    %v126 = vshrl.u32 %v125, 7
    %v127 = vsub.s32 3, %v126
    %v128 = vrot.slane %v54, %v127
    %v129 = vmul.f32 %v120, %v124
    %v130 = vmul.f32 %v119, %v128
    %131 = vrot.lane.b32.xlu0 %v59, 127
    %v132 = vpop.permute.xlu0 %131
    %133 = vrot.lane.b32.xlu0 %v60, 127
    %v134 = vpop.permute.xlu0 %133
    %vm135 = vcmp.lt.s32.totalorder %v66, 127
    %v136 = vsel %vm135, %v132, %v134
    %v137 = vsel %vm135, %v134, %v132
    %v138 = vlaneseq
    %v139 = vshrl.u32 %v138, 7
    %v140 = vsub.s32 5, %v139
    %v141 = vrot.slane %v53, %v140
    %v142 = vlaneseq
    %v143 = vshrl.u32 %v142, 7
    %v144 = vsub.s32 5, %v143
    %v145 = vrot.slane %v54, %v144
    %v146 = vmul.f32 %v136, %v141
    %v147 = vmul.f32 %v137, %v145
    %148 = vrot.lane.b32.xlu0 %v59, 113
    %v149 = vpop.permute.xlu0 %148
    %150 = vrot.lane.b32.xlu0 %v60, 113
    %v151 = vpop.permute.xlu0 %150
    %vm152 = vcmp.lt.s32.totalorder %v66, 113
    %v153 = vsel %vm152, %v149, %v151
    %v154 = vsel %vm152, %v151, %v149
    %v155 = vlaneseq
    %v156 = vshrl.u32 %v155, 7
    %v157 = vsub.s32 6, %v156
    %v158 = vrot.slane %v53, %v157
    %v159 = vlaneseq
    %v160 = vshrl.u32 %v159, 7
    %v161 = vsub.s32 6, %v160
    %v162 = vrot.slane %v54, %v161
    %v163 = vmul.f32 %v153, %v158
    %v164 = vmul.f32 %v154, %v162
    %165 = vrot.lane.b32.xlu0 %v59, 112
    %v166 = vpop.permute.xlu0 %165
    %167 = vrot.lane.b32.xlu0 %v60, 112
    %v168 = vpop.permute.xlu0 %167
    %vm169 = vcmp.lt.s32.totalorder %v66, 112
    %v170 = vsel %vm169, %v166, %v168
    %v171 = vsel %vm169, %v168, %v166
    %v172 = vlaneseq
    %v173 = vshrl.u32 %v172, 7
    %v174 = vsub.s32 7, %v173
    %v175 = vrot.slane %v53, %v174
    %v176 = vlaneseq
    %v177 = vshrl.u32 %v176, 7
    %v178 = vsub.s32 7, %v177
    %v179 = vrot.slane %v54, %v178
    %v180 = vmul.f32 %v170, %v175
    %v181 = vmul.f32 %v171, %v179
    %182 = vrot.lane.b32.xlu0 %v59, 111
    %v183 = vpop.permute.xlu0 %182
    %184 = vrot.lane.b32.xlu0 %v60, 111
    %v185 = vpop.permute.xlu0 %184
    %vm186 = vcmp.lt.s32.totalorder %v66, 111
    %v187 = vsel %vm186, %v183, %v185
    %v188 = vsel %vm186, %v185, %v183
    %v189 = vlaneseq
    %v190 = vshrl.u32 %v189, 7
    %v191 = vsub.s32 0, %v190
    %v192 = vrot.slane %v55, %v191
    %v193 = vlaneseq
    %v194 = vshrl.u32 %v193, 7
    %v195 = vsub.s32 0, %v194
    %v196 = vrot.slane %v56, %v195
    %v197 = vmul.f32 %v187, %v192
    %v198 = vmul.f32 %v188, %v196
    %v199 = vld [vmem:[%s2] sm:$0xf]
    %v200 = vpack.c.bf16 %v95, %v78
    %v201 = vpack.c.bf16 %v96, %v79
    %v202 = vpack.c.bf16 %v129, %v112
    %v203 = vpack.c.bf16 %v130, %v113
    %v204 = vpack.c.bf16 %v146, %v59
    %v205 = vpack.c.bf16 %v147, %v60
    %v206 = vpack.c.bf16 %v180, %v163
    %v207 = vpack.c.bf16 %v181, %v164
    %v208 = vpack.c.bf16 %v197, %v197
    %v209 = vpack.c.bf16 %v198, %v198
    %v210 = vld [vmem:[%s3] sm:$0xff]
    %212 = vset.pattern.permute.xlu0 0
    %213 = vperm.xlu0 %212, %v210
    %v214 = vpop.permute.xlu0 %213
    %vm216 = vcmask 588800
    %v218 = vsel %vm216, %v199, 0
    %vm220 = vcmask 1043456
    %v222 = vsel %vm220, %v208, 0
    %v225 = vsel %vm220, %v209, 0
    %227 = vmatprep.subr.bf16.mxu0 0
    %228 = vmatpush1.bf16.msra.mxu0 0
    %229 = vmatprep.subr.bf16.mxu0 0
    %230 = vmatpush1.bf16.msra.mxu0 0
    %231 = vmatprep.subr.bf16.mxu0 0
    %232 = vmatpush1.bf16.msra.mxu0 0
    %233 = vmatprep.subr.bf16.mxu0 %v225
    %234 = vmatpush1.bf16.msra.mxu0 %v222
    %235 = vmatprep.subr.bf16.mxu0 %v207
    %236 = vmatpush1.bf16.msra.mxu0 %v206
    %237 = vmatprep.subr.bf16.mxu0 %v205
    %238 = vmatpush1.bf16.msra.mxu0 %v204
    %239 = vmatprep.subr.bf16.mxu0 %v203
    %240 = vmatpush1.bf16.msra.mxu0 %v202
    %241 = vmatprep.subr.bf16.mxu0 %v201
    %242 = vmatpush1.bf16.msra.mxu0 %v200
    %243 = vmatprep.subr.bf16.mxu0 0
    %244 = vmatpush2.bf16.msra.mxu0 0
    %245 = vmatprep.subr.bf16.mxu0 0
    %246 = vmatpush2.bf16.msra.mxu0 0
    %247 = vmatprep.subr.bf16.mxu0 0
    %248 = vmatpush2.bf16.msra.mxu0 0
    %249 = vmatprep.subr.bf16.mxu0 0
    %250 = vmatpush2.bf16.msra.mxu0 0
    %251 = vmatprep.subr.bf16.mxu0 0
    %252 = vmatpush2.bf16.msra.mxu0 0
    %253 = vmatprep.subr.bf16.mxu0 0
    %254 = vmatpush2.bf16.msra.mxu0 0
    %255 = vmatprep.subr.bf16.mxu0 0
    %256 = vmatpush2.bf16.msra.mxu0 0
    %257 = vmatprep.subr.bf16.mxu0 0
    %258 = vmatpush2.bf16.msra.mxu0 0
    %259 = vmatprep.mubr.bf16.mxu0 0
    %260 = vmatmul.mubr.bf16.gmra.mxu0 %v218
    %v261 = vpop.f32.mrf.mxu0
    %v262 = vadd.f32 %v214, %v261
    %v263 = vpop.f32.mrf.mxu0
    %v264 = vadd.f32 %v214, %v263
    %v265 = vpop.f32.mrf.mxu0
    %v266 = vpop.f32.mrf.mxu0
    %267 = vdwg.mxu0
    %v268 = vmax.f32 %v262, 0.0
    %v269 = vmax.f32 %v264, 0.0
    %270 = vrot.lane.b32.xlu0 %v268, 17
    %v271 = vpop.permute.xlu0 %270
    %272 = vrot.lane.b32.xlu0 %v269, 17
    %v273 = vpop.permute.xlu0 %272
    %v274 = vsel %vm67, %v271, %v273
    %v275 = vsel %vm67, %v273, %v271
    %v276 = vmul.f32 %v275, %v73
    %v277 = vmul.f32 %v274, %v77
    %278 = vrot.lane.b32.xlu0 %v268, 16
    %v279 = vpop.permute.xlu0 %278
    %280 = vrot.lane.b32.xlu0 %v269, 16
    %v281 = vpop.permute.xlu0 %280
    %v282 = vsel %vm84, %v279, %v281
    %v283 = vsel %vm84, %v281, %v279
    %v284 = vmul.f32 %v283, %v90
    %v285 = vmul.f32 %v282, %v94
    %286 = vrot.lane.b32.xlu0 %v268, 15
    %v287 = vpop.permute.xlu0 %286
    %288 = vrot.lane.b32.xlu0 %v269, 15
    %v289 = vpop.permute.xlu0 %288
    %v290 = vsel %vm101, %v287, %v289
    %v291 = vsel %vm101, %v289, %v287
    %v292 = vmul.f32 %v291, %v107
    %v293 = vmul.f32 %v290, %v111
    %294 = vrot.lane.b32.xlu0 %v268, 1
    %v295 = vpop.permute.xlu0 %294
    %296 = vrot.lane.b32.xlu0 %v269, 1
    %v297 = vpop.permute.xlu0 %296
    %v298 = vsel %vm118, %v295, %v297
    %v299 = vsel %vm118, %v297, %v295
    %v300 = vmul.f32 %v299, %v124
    %v301 = vmul.f32 %v298, %v128
    %302 = vrot.lane.b32.xlu0 %v268, 127
    %v303 = vpop.permute.xlu0 %302
    %304 = vrot.lane.b32.xlu0 %v269, 127
    %v305 = vpop.permute.xlu0 %304
    %v306 = vsel %vm135, %v303, %v305
    %v307 = vsel %vm135, %v305, %v303
    %v308 = vmul.f32 %v306, %v141
    %v309 = vmul.f32 %v307, %v145
    %310 = vrot.lane.b32.xlu0 %v268, 113
    %v311 = vpop.permute.xlu0 %310
    %312 = vrot.lane.b32.xlu0 %v269, 113
    %v313 = vpop.permute.xlu0 %312
    %v314 = vsel %vm152, %v311, %v313
    %v315 = vsel %vm152, %v313, %v311
    %v316 = vmul.f32 %v314, %v158
    %v317 = vmul.f32 %v315, %v162
    %318 = vrot.lane.b32.xlu0 %v268, 112
    %v319 = vpop.permute.xlu0 %318
    %320 = vrot.lane.b32.xlu0 %v269, 112
    %v321 = vpop.permute.xlu0 %320
    %v322 = vsel %vm169, %v319, %v321
    %v323 = vsel %vm169, %v321, %v319
    %v324 = vmul.f32 %v322, %v175
    %v325 = vmul.f32 %v323, %v179
    %326 = vrot.lane.b32.xlu0 %v268, 111
    %v327 = vpop.permute.xlu0 %326
    %328 = vrot.lane.b32.xlu0 %v269, 111
    %v329 = vpop.permute.xlu0 %328
    %v330 = vsel %vm186, %v327, %v329
    %v331 = vsel %vm186, %v329, %v327
    %v332 = vmul.f32 %v330, %v192
    %v333 = vmul.f32 %v331, %v196
    %v334 = vld [vmem:[%s4] sm:$0xf]
    %v335 = vpack.c.bf16 %v284, %v276
    %v336 = vpack.c.bf16 %v285, %v277
    %v337 = vpack.c.bf16 %v300, %v292
    %v338 = vpack.c.bf16 %v301, %v293
    %v339 = vpack.c.bf16 %v308, %v268
    %v340 = vpack.c.bf16 %v309, %v269
    %v341 = vpack.c.bf16 %v324, %v316
    %v342 = vpack.c.bf16 %v325, %v317
    %v343 = vpack.c.bf16 %v332, %v332
    %v344 = vpack.c.bf16 %v333, %v333
    %v345 = vld [vmem:[%s5] sm:$0xff]
    %347 = vset.pattern.permute.xlu0 0
    %348 = vperm.xlu0 %347, %v345
    %v349 = vpop.permute.xlu0 %348
    %v352 = vsel %vm216, %v334, 0
    %v355 = vsel %vm220, %v343, 0
    %v358 = vsel %vm220, %v344, 0
    %360 = vmatprep.subr.bf16.mxu0 0
    %361 = vmatpush1.bf16.msra.mxu0 0
    %362 = vmatprep.subr.bf16.mxu0 0
    %363 = vmatpush1.bf16.msra.mxu0 0
    %364 = vmatprep.subr.bf16.mxu0 0
    %365 = vmatpush1.bf16.msra.mxu0 0
    %366 = vmatprep.subr.bf16.mxu0 %v358
    %367 = vmatpush1.bf16.msra.mxu0 %v355
    %368 = vmatprep.subr.bf16.mxu0 %v342
    %369 = vmatpush1.bf16.msra.mxu0 %v341
    %370 = vmatprep.subr.bf16.mxu0 %v340
    %371 = vmatpush1.bf16.msra.mxu0 %v339
    %372 = vmatprep.subr.bf16.mxu0 %v338
    %373 = vmatpush1.bf16.msra.mxu0 %v337
    %374 = vmatprep.subr.bf16.mxu0 %v336
    %375 = vmatpush1.bf16.msra.mxu0 %v335
    %376 = vmatprep.subr.bf16.mxu0 0
    %377 = vmatpush2.bf16.msra.mxu0 0
    %378 = vmatprep.subr.bf16.mxu0 0
    %379 = vmatpush2.bf16.msra.mxu0 0
    %380 = vmatprep.subr.bf16.mxu0 0
    %381 = vmatpush2.bf16.msra.mxu0 0
    %382 = vmatprep.subr.bf16.mxu0 0
    %383 = vmatpush2.bf16.msra.mxu0 0
    %384 = vmatprep.subr.bf16.mxu0 0
    %385 = vmatpush2.bf16.msra.mxu0 0
    %386 = vmatprep.subr.bf16.mxu0 0
    %387 = vmatpush2.bf16.msra.mxu0 0
    %388 = vmatprep.subr.bf16.mxu0 0
    %389 = vmatpush2.bf16.msra.mxu0 0
    %390 = vmatprep.subr.bf16.mxu0 0
    %391 = vmatpush2.bf16.msra.mxu0 0
    %392 = vmatprep.mubr.bf16.mxu0 0
    %393 = vmatmul.mubr.bf16.gmra.mxu0 %v352
    %v394 = vpop.f32.mrf.mxu0
    %v395 = vadd.f32 %v349, %v394
    %v396 = vpop.f32.mrf.mxu0
    %v397 = vadd.f32 %v349, %v396
    %v398 = vpop.f32.mrf.mxu0
    %v399 = vpop.f32.mrf.mxu0
    %400 = vdwg.mxu0
    %v401 = vadd.f32 %v395, %v57
    %v402 = vadd.f32 %v397, %v58
    %403 = vst [vmem:[#allocation7] sm:$0xff] %v401
    %404 = vst [vmem:[#allocation7 + $0x8] sm:$0xff] %v402
    %s405 = scalar_lea.vmem [#allocation2], 16
    %v406 = vld [vmem:[%s405] sm:$0xff]
    %v407 = vld [vmem:[%s405 + $0x8] sm:$0xff]
    %v408 = vmax.f32 %v406, 0.0
    %v409 = vmax.f32 %v407, 0.0
    %410 = vrot.lane.b32.xlu0 %v408, 17
    %v411 = vpop.permute.xlu0 %410
    %412 = vrot.lane.b32.xlu0 %v409, 17
    %v413 = vpop.permute.xlu0 %412
    %v414 = vsel %vm67, %v411, %v413
    %v415 = vsel %vm67, %v413, %v411
    %v416 = vmul.f32 %v415, %v73
    %v417 = vmul.f32 %v414, %v77
    %418 = vrot.lane.b32.xlu0 %v408, 16
    %v419 = vpop.permute.xlu0 %418
    %420 = vrot.lane.b32.xlu0 %v409, 16
    %v421 = vpop.permute.xlu0 %420
    %v422 = vsel %vm84, %v419, %v421
    %v423 = vsel %vm84, %v421, %v419
    %v424 = vmul.f32 %v423, %v90
    %v425 = vmul.f32 %v422, %v94
    %426 = vrot.lane.b32.xlu0 %v408, 15
    %v427 = vpop.permute.xlu0 %426
    %428 = vrot.lane.b32.xlu0 %v409, 15
    %v429 = vpop.permute.xlu0 %428
    %v430 = vsel %vm101, %v427, %v429
    %v431 = vsel %vm101, %v429, %v427
    %v432 = vmul.f32 %v431, %v107
    %v433 = vmul.f32 %v430, %v111
    %434 = vrot.lane.b32.xlu0 %v408, 1
    %v435 = vpop.permute.xlu0 %434
    %436 = vrot.lane.b32.xlu0 %v409, 1
    %v437 = vpop.permute.xlu0 %436
    %v438 = vsel %vm118, %v435, %v437
    %v439 = vsel %vm118, %v437, %v435
    %v440 = vmul.f32 %v439, %v124
    %v441 = vmul.f32 %v438, %v128
    %442 = vrot.lane.b32.xlu0 %v408, 127
    %v443 = vpop.permute.xlu0 %442
    %444 = vrot.lane.b32.xlu0 %v409, 127
    %v445 = vpop.permute.xlu0 %444
    %v446 = vsel %vm135, %v443, %v445
    %v447 = vsel %vm135, %v445, %v443
    %v448 = vmul.f32 %v446, %v141
    %v449 = vmul.f32 %v447, %v145
    %450 = vrot.lane.b32.xlu0 %v408, 113
    %v451 = vpop.permute.xlu0 %450
    %452 = vrot.lane.b32.xlu0 %v409, 113
    %v453 = vpop.permute.xlu0 %452
    %v454 = vsel %vm152, %v451, %v453
    %v455 = vsel %vm152, %v453, %v451
    %v456 = vmul.f32 %v454, %v158
    %v457 = vmul.f32 %v455, %v162
    %458 = vrot.lane.b32.xlu0 %v408, 112
    %v459 = vpop.permute.xlu0 %458
    %460 = vrot.lane.b32.xlu0 %v409, 112
    %v461 = vpop.permute.xlu0 %460
    %v462 = vsel %vm169, %v459, %v461
    %v463 = vsel %vm169, %v461, %v459
    %v464 = vmul.f32 %v462, %v175
    %v465 = vmul.f32 %v463, %v179
    %466 = vrot.lane.b32.xlu0 %v408, 111
    %v467 = vpop.permute.xlu0 %466
    %468 = vrot.lane.b32.xlu0 %v409, 111
    %v469 = vpop.permute.xlu0 %468
    %v470 = vsel %vm186, %v467, %v469
    %v471 = vsel %vm186, %v469, %v467
    %v472 = vmul.f32 %v470, %v192
    %v473 = vmul.f32 %v471, %v196
    %v474 = vld [vmem:[%s2] sm:$0xf]
    %v475 = vpack.c.bf16 %v424, %v416
    %v476 = vpack.c.bf16 %v425, %v417
    %v477 = vpack.c.bf16 %v440, %v432
    %v478 = vpack.c.bf16 %v441, %v433
    %v479 = vpack.c.bf16 %v448, %v408
    %v480 = vpack.c.bf16 %v449, %v409
    %v481 = vpack.c.bf16 %v464, %v456
    %v482 = vpack.c.bf16 %v465, %v457
    %v483 = vpack.c.bf16 %v472, %v472
    %v484 = vpack.c.bf16 %v473, %v473
    %v485 = vld [vmem:[%s3] sm:$0xff]
    %487 = vset.pattern.permute.xlu0 0
    %488 = vperm.xlu0 %487, %v485
    %v489 = vpop.permute.xlu0 %488
    %v492 = vsel %vm216, %v474, 0
    %v495 = vsel %vm220, %v483, 0
    %v498 = vsel %vm220, %v484, 0
    %500 = vmatprep.subr.bf16.mxu0 0
    %501 = vmatpush1.bf16.msra.mxu0 0
    %502 = vmatprep.subr.bf16.mxu0 0
    %503 = vmatpush1.bf16.msra.mxu0 0
    %504 = vmatprep.subr.bf16.mxu0 0
    %505 = vmatpush1.bf16.msra.mxu0 0
    %506 = vmatprep.subr.bf16.mxu0 %v498
    %507 = vmatpush1.bf16.msra.mxu0 %v495
    %508 = vmatprep.subr.bf16.mxu0 %v482
    %509 = vmatpush1.bf16.msra.mxu0 %v481
    %510 = vmatprep.subr.bf16.mxu0 %v480
    %511 = vmatpush1.bf16.msra.mxu0 %v479
    %512 = vmatprep.subr.bf16.mxu0 %v478
    %513 = vmatpush1.bf16.msra.mxu0 %v477
    %514 = vmatprep.subr.bf16.mxu0 %v476
    %515 = vmatpush1.bf16.msra.mxu0 %v475
    %516 = vmatprep.subr.bf16.mxu0 0
    %517 = vmatpush2.bf16.msra.mxu0 0
    %518 = vmatprep.subr.bf16.mxu0 0
    %519 = vmatpush2.bf16.msra.mxu0 0
    %520 = vmatprep.subr.bf16.mxu0 0
    %521 = vmatpush2.bf16.msra.mxu0 0
    %522 = vmatprep.subr.bf16.mxu0 0
    %523 = vmatpush2.bf16.msra.mxu0 0
    %524 = vmatprep.subr.bf16.mxu0 0
    %525 = vmatpush2.bf16.msra.mxu0 0
    %526 = vmatprep.subr.bf16.mxu0 0
    %527 = vmatpush2.bf16.msra.mxu0 0
    %528 = vmatprep.subr.bf16.mxu0 0
    %529 = vmatpush2.bf16.msra.mxu0 0
    %530 = vmatprep.subr.bf16.mxu0 0
    %531 = vmatpush2.bf16.msra.mxu0 0
    %532 = vmatprep.mubr.bf16.mxu0 0
    %533 = vmatmul.mubr.bf16.gmra.mxu0 %v492
    %v534 = vpop.f32.mrf.mxu0
    %v535 = vadd.f32 %v489, %v534
    %v536 = vpop.f32.mrf.mxu0
    %v537 = vadd.f32 %v489, %v536
    %v538 = vpop.f32.mrf.mxu0
    %v539 = vpop.f32.mrf.mxu0
    %540 = vdwg.mxu0
    %v541 = vmax.f32 %v535, 0.0
    %v542 = vmax.f32 %v537, 0.0
    %543 = vrot.lane.b32.xlu0 %v541, 17
    %v544 = vpop.permute.xlu0 %543
    %545 = vrot.lane.b32.xlu0 %v542, 17
    %v546 = vpop.permute.xlu0 %545
    %v547 = vsel %vm67, %v544, %v546
    %v548 = vsel %vm67, %v546, %v544
    %v549 = vmul.f32 %v548, %v73
    %v550 = vmul.f32 %v547, %v77
    %551 = vrot.lane.b32.xlu0 %v541, 16
    %v552 = vpop.permute.xlu0 %551
    %553 = vrot.lane.b32.xlu0 %v542, 16
    %v554 = vpop.permute.xlu0 %553
    %v555 = vsel %vm84, %v552, %v554
    %v556 = vsel %vm84, %v554, %v552
    %v557 = vmul.f32 %v556, %v90
    %v558 = vmul.f32 %v555, %v94
    %559 = vrot.lane.b32.xlu0 %v541, 15
    %v560 = vpop.permute.xlu0 %559
    %561 = vrot.lane.b32.xlu0 %v542, 15
    %v562 = vpop.permute.xlu0 %561
    %v563 = vsel %vm101, %v560, %v562
    %v564 = vsel %vm101, %v562, %v560
    %v565 = vmul.f32 %v564, %v107
    %v566 = vmul.f32 %v563, %v111
    %567 = vrot.lane.b32.xlu0 %v541, 1
    %v568 = vpop.permute.xlu0 %567
    %569 = vrot.lane.b32.xlu0 %v542, 1
    %v570 = vpop.permute.xlu0 %569
    %v571 = vsel %vm118, %v568, %v570
    %v572 = vsel %vm118, %v570, %v568
    %v573 = vmul.f32 %v572, %v124
    %v574 = vmul.f32 %v571, %v128
    %575 = vrot.lane.b32.xlu0 %v541, 127
    %v576 = vpop.permute.xlu0 %575
    %577 = vrot.lane.b32.xlu0 %v542, 127
    %v578 = vpop.permute.xlu0 %577
    %v579 = vsel %vm135, %v576, %v578
    %v580 = vsel %vm135, %v578, %v576
    %v581 = vmul.f32 %v579, %v141
    %v582 = vmul.f32 %v580, %v145
    %583 = vrot.lane.b32.xlu0 %v541, 113
    %v584 = vpop.permute.xlu0 %583
    %585 = vrot.lane.b32.xlu0 %v542, 113
    %v586 = vpop.permute.xlu0 %585
    %v587 = vsel %vm152, %v584, %v586
    %v588 = vsel %vm152, %v586, %v584
    %v589 = vmul.f32 %v587, %v158
    %v590 = vmul.f32 %v588, %v162
    %591 = vrot.lane.b32.xlu0 %v541, 112
    %v592 = vpop.permute.xlu0 %591
    %593 = vrot.lane.b32.xlu0 %v542, 112
    %v594 = vpop.permute.xlu0 %593
    %v595 = vsel %vm169, %v592, %v594
    %v596 = vsel %vm169, %v594, %v592
    %v597 = vmul.f32 %v595, %v175
    %v598 = vmul.f32 %v596, %v179
    %599 = vrot.lane.b32.xlu0 %v541, 111
    %v600 = vpop.permute.xlu0 %599
    %601 = vrot.lane.b32.xlu0 %v542, 111
    %v602 = vpop.permute.xlu0 %601
    %v603 = vsel %vm186, %v600, %v602
    %v604 = vsel %vm186, %v602, %v600
    %v605 = vmul.f32 %v603, %v192
    %v606 = vmul.f32 %v604, %v196
    %v607 = vld [vmem:[%s4] sm:$0xf]
    %v608 = vpack.c.bf16 %v557, %v549
    %v609 = vpack.c.bf16 %v558, %v550
    %v610 = vpack.c.bf16 %v573, %v565
    %v611 = vpack.c.bf16 %v574, %v566
    %v612 = vpack.c.bf16 %v581, %v541
    %v613 = vpack.c.bf16 %v582, %v542
    %v614 = vpack.c.bf16 %v597, %v589
    %v615 = vpack.c.bf16 %v598, %v590
    %v616 = vpack.c.bf16 %v605, %v605
    %v617 = vpack.c.bf16 %v606, %v606
    %v618 = vld [vmem:[%s5] sm:$0xff]
    %620 = vset.pattern.permute.xlu0 0
    %621 = vperm.xlu0 %620, %v618
    %v622 = vpop.permute.xlu0 %621
    %v625 = vsel %vm216, %v607, 0
    %v628 = vsel %vm220, %v616, 0
    %v631 = vsel %vm220, %v617, 0
    %633 = vmatprep.subr.bf16.mxu0 0
    %634 = vmatpush1.bf16.msra.mxu0 0
    %635 = vmatprep.subr.bf16.mxu0 0
    %636 = vmatpush1.bf16.msra.mxu0 0
    %637 = vmatprep.subr.bf16.mxu0 0
    %638 = vmatpush1.bf16.msra.mxu0 0
    %639 = vmatprep.subr.bf16.mxu0 %v631
    %640 = vmatpush1.bf16.msra.mxu0 %v628
    %641 = vmatprep.subr.bf16.mxu0 %v615
    %642 = vmatpush1.bf16.msra.mxu0 %v614
    %643 = vmatprep.subr.bf16.mxu0 %v613
    %644 = vmatpush1.bf16.msra.mxu0 %v612
    %645 = vmatprep.subr.bf16.mxu0 %v611
    %646 = vmatpush1.bf16.msra.mxu0 %v610
    %647 = vmatprep.subr.bf16.mxu0 %v609
    %648 = vmatpush1.bf16.msra.mxu0 %v608
    %649 = vmatprep.subr.bf16.mxu0 0
    %650 = vmatpush2.bf16.msra.mxu0 0
    %651 = vmatprep.subr.bf16.mxu0 0
    %652 = vmatpush2.bf16.msra.mxu0 0
    %653 = vmatprep.subr.bf16.mxu0 0
    %654 = vmatpush2.bf16.msra.mxu0 0
    %655 = vmatprep.subr.bf16.mxu0 0
    %656 = vmatpush2.bf16.msra.mxu0 0
    %657 = vmatprep.subr.bf16.mxu0 0
    %658 = vmatpush2.bf16.msra.mxu0 0
    %659 = vmatprep.subr.bf16.mxu0 0
    %660 = vmatpush2.bf16.msra.mxu0 0
    %661 = vmatprep.subr.bf16.mxu0 0
    %662 = vmatpush2.bf16.msra.mxu0 0
    %663 = vmatprep.subr.bf16.mxu0 0
    %664 = vmatpush2.bf16.msra.mxu0 0
    %665 = vmatprep.mubr.bf16.mxu0 0
    %666 = vmatmul.mubr.bf16.gmra.mxu0 %v625
    %v667 = vpop.f32.mrf.mxu0
    %v668 = vadd.f32 %v622, %v667
    %v669 = vpop.f32.mrf.mxu0
    %v670 = vadd.f32 %v622, %v669
    %v671 = vpop.f32.mrf.mxu0
    %v672 = vpop.f32.mrf.mxu0
    %673 = vdwg.mxu0
    %v674 = vadd.f32 %v668, %v406
    %v675 = vadd.f32 %v670, %v407
    %s676 = scalar_lea.vmem [#allocation7], 16
    %677 = vst [vmem:[%s676] sm:$0xff] %v674
    %678 = vst [vmem:[%s676 + $0x8] sm:$0xff] %v675
    // Predicated region
    $region34: #{tpu_custom_call.1} parent=1 // pred_check
      _
    $region35: #{tpu_custom_call.1} parent=1 // pred_check_branch
      %680 = sbr.rel (0) target = $region37
    $region36: #{tpu_custom_call.1} parent=1 // pred_region
      %s682 = ssub.s32 512, 512
      %683 = vsyncadd [#allocation4], %s682
      %s684 = sshll.u32 [#allocation7], 4
      %s685 = int_to_ptr.vmem [resolvable:$true] %s684
      %690 = dma.vmem_to_hbm [thread:$0]  %s685, 512, %s6, [#allocation4], 256, 256, 16
    $region37: #{tpu_custom_call.1} parent=1 // pred_fallthru
      _
    // Predicated region
    $region38: #{tpu_custom_call.1} parent=1 // pred_check
      _
    $region39: #{tpu_custom_call.1} parent=1 // pred_check_branch
      %692 = sbr.rel (0) target = $region41
    $region40: #{tpu_custom_call.1} parent=1 // pred_region
      %693 = dma.done [#allocation4], 512
    $region41: #{tpu_custom_call.1} parent=1 // pred_fallthru
      _
    %694 = vsyncpa [#allocation3], 1
    %695 = vsyncpa [#allocation6], 1
    %696 = vsyncpa [#allocation4], 1

</llo_original>
